<compile_context>
chip_gen: v5e
topology: v5e:2x2
jax: 0.10.0
libtpu: 0.0.40
codegen_flags: <defaults>
</compile_context>

<pallas_src>
import functools

import jax
import jax.numpy as jnp
import numpy as np
from jax.experimental import pallas as pl
from jax.experimental.pallas import tpu as pltpu


def _shift_kernel(x_ref, out_ref, xpad_ref, *, kernel_size: int, h: int, w: int,
                  tc: int):
    # x_ref   : (1, tc, h, w)         input channel block (VMEM)
    # out_ref : (1, tc, k*k, h, w)    output block (VMEM); wrapper reshapes later
    # xpad_ref: (tc, h+2p, w+2p)      zero-halo scratch (VMEM, persists per core)
    k = kernel_size
    p = k // 2
    hp, wp = h + 2 * p, w + 2 * p
    dt = x_ref.dtype

    if p > 0:
        # Re-zero only the thin halo border each step (cheap, and avoids any
        # first-iteration bookkeeping that would break under per-core grids).
        xpad_ref[:, 0:p, :] = jnp.zeros((tc, p, wp), dt)
        xpad_ref[:, p + h:, :] = jnp.zeros((tc, p, wp), dt)
        xpad_ref[:, :, 0:p] = jnp.zeros((tc, hp, p), dt)
        xpad_ref[:, :, p + w:] = jnp.zeros((tc, hp, p), dt)

    # Interior: current channel block. Padding now exists only in VMEM.
    xpad_ref[:, p:p + h, p:p + w] = x_ref[0]

    # k*k bulk copies, each moving all tc channels at once.
    for dy in range(k):
        for dx in range(k):
            out_ref[0, :, dy * k + dx, :, :] = xpad_ref[:, dy:dy + h, dx:dx + w]


def _pick_channel_block(c: int, kk: int, h: int, w: int, p: int,
                        itemsize: int) -> int:
    """Channels per grid step, sized for double-buffered VMEM blocks."""
    hp, wp = h + 2 * p, w + 2 * p
    # in + out blocks are double-buffered by the pipeline; halo scratch is single.
    per_ch = (2 * (1 + kk) * h * w + hp * wp) * itemsize
    budget = 24 << 20          # leaves headroom even on v7x (64 MiB VMEM)
    max_tc = max(1, budget // per_ch)
    if c <= max_tc:
        return c               # whole channel dim in one block (test case)
    # Largest divisor of c that fits, so blocks tile the channel dim exactly.
    for t in range(int(max_tc), 0, -1):
        if c % t == 0:
            return t
    return 1


def shift(x: jax.Array, kernel_size: int = 3) -> jax.Array:
    """Pallas equivalent of Shift.forward.

    Args:
        x: (N, C, H, W) input.
    Returns:
        (N, C * kernel_size**2, H, W) tensor where output channel
        i*k*k + dy*k + dx holds x zero-padded and shifted by (dy-p, dx-p).
    """
    n, c, h, w = x.shape
    k = kernel_size
    p = k // 2
    kk = k * k
    itemsize = np.dtype(x.dtype).itemsize

    tc = _pick_channel_block(c, kk, h, w, p, itemsize)
    grid = (n, pl.cdiv(c, tc))

    kernel = functools.partial(_shift_kernel, kernel_size=k, h=h, w=w, tc=tc)

    out5 = pl.pallas_call(
        kernel,
        out_shape=jax.ShapeDtypeStruct((n, c, kk, h, w), x.dtype),
        grid_spec=pltpu.PrefetchScalarGridSpec(
            num_scalar_prefetch=0,
            grid=grid,
            in_specs=[
                pl.BlockSpec((1, tc, h, w), lambda ni, ci: (ni, ci, 0, 0)),
            ],
            out_specs=pl.BlockSpec((1, tc, kk, h, w),
                                   lambda ni, ci: (ni, ci, 0, 0, 0)),
            scratch_shapes=[pltpu.VMEM((tc, h + 2 * p, w + 2 * p), x.dtype)],
        ),
        compiler_params=pltpu.CompilerParams(
            dimension_semantics=("parallel", "parallel"),
            vmem_limit_bytes=32 * 1024 * 1024,
        ),
    )(x)

    # Contiguous major-dim merge: free (metadata-only) reshape in XLA.
    return out5.reshape(n, c * kk, h, w)


def _reference_shift(x: np.ndarray, kernel_size: int = 3) -> np.ndarray:
    """Pure-numpy port of the PyTorch Shift.forward for verification."""
    n, c, h, w = x.shape
    pad = kernel_size // 2
    x_pad = np.pad(x, ((0, 0), (0, 0), (pad, pad), (pad, pad)))
    layers = []
    for i in range(c):
        for y in range(kernel_size):
            for xs in range(kernel_size):
                layers.append(x_pad[:, i:i + 1, y:y + h, xs:xs + w])
    return np.concatenate(layers, axis=1)


if __name__ == "__main__":
    key = jax.random.PRNGKey(0)
    N, C, H, W = 2, 4, 16, 16
    kernel_size = 3
    x = jax.random.normal(key, (N, C, H, W), dtype=jnp.float32)

    out = shift(x, kernel_size=kernel_size)
    out = jax.block_until_ready(out)

    ref = _reference_shift(np.asarray(x), kernel_size=kernel_size)
    assert out.shape == ref.shape, (out.shape, ref.shape)
    np.testing.assert_allclose(np.asarray(out), ref, rtol=0, atol=0)
    print("KERNEL_OK")
</pallas_src>

<mosaic_0001>
module attributes {stable_mosaic.version = 11 : i64} {
  func.func @_shift_kernel(%arg0: i32, %arg1: i32, %arg2: memref<1x4x16x16xf32, #tpu.memory_space<vmem>>, %arg3: memref<1x4x9x16x16xf32, #tpu.memory_space<vmem>>, %arg4: memref<4x18x18xf32, #tpu.memory_space<vmem>>) attributes {dimension_semantics = [#tpu.dimension_semantics<parallel>, #tpu.dimension_semantics<parallel>], iteration_bounds = array<i64: 2, 1>, scalar_prefetch = 0 : i64, scratch_operands = 1 : i64, tpu.core_type = #tpu.core_type<tc>, window_params = [{transform_indices = @transform_0, window_bounds = array<i64: 1, 4, 16, 16>}, {transform_indices = @transform_1, window_bounds = array<i64: 1, 4, 9, 16, 16>}]} {
    %cst = arith.constant 0.000000e+00 : f32
    %0 = vector.broadcast %cst : f32 to vector<4x1x18xf32>
    %c0 = arith.constant 0 : index
    %c0_0 = arith.constant 0 : index
    %c0_1 = arith.constant 0 : index
    %1 = vector.load %arg4[%c0, %c0_0, %c0_1] : memref<4x18x18xf32, #tpu.memory_space<vmem>>, vector<4x1x18xf32>
    tpu.vector_store %arg4[%c0, %c0_0, %c0_1], %0 {strides = array<i32>} : memref<4x18x18xf32, #tpu.memory_space<vmem>>, vector<4x1x18xf32>,
    %cst_2 = arith.constant 0.000000e+00 : f32
    %2 = vector.broadcast %cst_2 : f32 to vector<4x1x18xf32>
    %c0_3 = arith.constant 0 : index
    %c17 = arith.constant 17 : index
    %c0_4 = arith.constant 0 : index
    %3 = vector.load %arg4[%c0_3, %c17, %c0_4] : memref<4x18x18xf32, #tpu.memory_space<vmem>>, vector<4x1x18xf32>
    tpu.vector_store %arg4[%c0_3, %c17, %c0_4], %2 {strides = array<i32>} : memref<4x18x18xf32, #tpu.memory_space<vmem>>, vector<4x1x18xf32>,
    %cst_5 = arith.constant 0.000000e+00 : f32
    %4 = vector.broadcast %cst_5 : f32 to vector<4x18x1xf32>
    %c0_6 = arith.constant 0 : index
    %c0_7 = arith.constant 0 : index
    %c0_8 = arith.constant 0 : index
    %5 = vector.load %arg4[%c0_6, %c0_7, %c0_8] : memref<4x18x18xf32, #tpu.memory_space<vmem>>, vector<4x18x1xf32>
    tpu.vector_store %arg4[%c0_6, %c0_7, %c0_8], %4 {strides = array<i32>} : memref<4x18x18xf32, #tpu.memory_space<vmem>>, vector<4x18x1xf32>,
    %cst_9 = arith.constant 0.000000e+00 : f32
    %6 = vector.broadcast %cst_9 : f32 to vector<4x18x1xf32>
    %c0_10 = arith.constant 0 : index
    %c0_11 = arith.constant 0 : index
    %c17_12 = arith.constant 17 : index
    %7 = vector.load %arg4[%c0_10, %c0_11, %c17_12] : memref<4x18x18xf32, #tpu.memory_space<vmem>>, vector<4x18x1xf32>
    tpu.vector_store %arg4[%c0_10, %c0_11, %c17_12], %6 {strides = array<i32>} : memref<4x18x18xf32, #tpu.memory_space<vmem>>, vector<4x18x1xf32>,
    %c0_13 = arith.constant 0 : index
    %c0_14 = arith.constant 0 : index
    %c0_15 = arith.constant 0 : index
    %c0_16 = arith.constant 0 : index
    %8 = vector.load %arg2[%c0_13, %c0_14, %c0_15, %c0_16] : memref<1x4x16x16xf32, #tpu.memory_space<vmem>>, vector<1x4x16x16xf32>
    %9 = vector.shape_cast %8 : vector<1x4x16x16xf32> to vector<4x16x16xf32>
    %c0_17 = arith.constant 0 : index
    %c1 = arith.constant 1 : index
    %c1_18 = arith.constant 1 : index
    %10 = vector.load %arg4[%c0_17, %c1, %c1_18] : memref<4x18x18xf32, #tpu.memory_space<vmem>>, vector<4x16x16xf32>
    tpu.vector_store %arg4[%c0_17, %c1, %c1_18], %9 {strides = array<i32>} : memref<4x18x18xf32, #tpu.memory_space<vmem>>, vector<4x16x16xf32>,
    %c0_19 = arith.constant 0 : index
    %c0_20 = arith.constant 0 : index
    %c0_21 = arith.constant 0 : index
    %11 = vector.load %arg4[%c0_19, %c0_20, %c0_21] : memref<4x18x18xf32, #tpu.memory_space<vmem>>, vector<4x16x16xf32>
    %c0_22 = arith.constant 0 : index
    %c0_23 = arith.constant 0 : index
    %c0_24 = arith.constant 0 : index
    %c0_25 = arith.constant 0 : index
    %c0_26 = arith.constant 0 : index
    %12 = vector.load %arg3[%c0_22, %c0_23, %c0_24, %c0_25, %c0_26] : memref<1x4x9x16x16xf32, #tpu.memory_space<vmem>>, vector<1x4x1x16x16xf32>
    %13 = vector.shape_cast %12 : vector<1x4x1x16x16xf32> to vector<4x16x16xf32>
    %14 = vector.shape_cast %11 : vector<4x16x16xf32> to vector<1x4x1x16x16xf32>
    tpu.vector_store %arg3[%c0_22, %c0_23, %c0_24, %c0_25, %c0_26], %14 {strides = array<i32>} : memref<1x4x9x16x16xf32, #tpu.memory_space<vmem>>, vector<1x4x1x16x16xf32>,
    %c0_27 = arith.constant 0 : index
    %c0_28 = arith.constant 0 : index
    %c1_29 = arith.constant 1 : index
    %15 = vector.load %arg4[%c0_27, %c0_28, %c1_29] : memref<4x18x18xf32, #tpu.memory_space<vmem>>, vector<4x16x16xf32>
    %c0_30 = arith.constant 0 : index
    %c0_31 = arith.constant 0 : index
    %c1_32 = arith.constant 1 : index
    %c0_33 = arith.constant 0 : index
    %c0_34 = arith.constant 0 : index
    %16 = vector.load %arg3[%c0_30, %c0_31, %c1_32, %c0_33, %c0_34] : memref<1x4x9x16x16xf32, #tpu.memory_space<vmem>>, vector<1x4x1x16x16xf32>
    %17 = vector.shape_cast %16 : vector<1x4x1x16x16xf32> to vector<4x16x16xf32>
    %18 = vector.shape_cast %15 : vector<4x16x16xf32> to vector<1x4x1x16x16xf32>
    tpu.vector_store %arg3[%c0_30, %c0_31, %c1_32, %c0_33, %c0_34], %18 {strides = array<i32>} : memref<1x4x9x16x16xf32, #tpu.memory_space<vmem>>, vector<1x4x1x16x16xf32>,
    %c0_35 = arith.constant 0 : index
    %c0_36 = arith.constant 0 : index
    %c2 = arith.constant 2 : index
    %19 = vector.load %arg4[%c0_35, %c0_36, %c2] : memref<4x18x18xf32, #tpu.memory_space<vmem>>, vector<4x16x16xf32>
    %c0_37 = arith.constant 0 : index
    %c0_38 = arith.constant 0 : index
    %c2_39 = arith.constant 2 : index
    %c0_40 = arith.constant 0 : index
    %c0_41 = arith.constant 0 : index
    %20 = vector.load %arg3[%c0_37, %c0_38, %c2_39, %c0_40, %c0_41] : memref<1x4x9x16x16xf32, #tpu.memory_space<vmem>>, vector<1x4x1x16x16xf32>
    %21 = vector.shape_cast %20 : vector<1x4x1x16x16xf32> to vector<4x16x16xf32>
    %22 = vector.shape_cast %19 : vector<4x16x16xf32> to vector<1x4x1x16x16xf32>
    tpu.vector_store %arg3[%c0_37, %c0_38, %c2_39, %c0_40, %c0_41], %22 {strides = array<i32>} : memref<1x4x9x16x16xf32, #tpu.memory_space<vmem>>, vector<1x4x1x16x16xf32>,
    %c0_42 = arith.constant 0 : index
    %c1_43 = arith.constant 1 : index
    %c0_44 = arith.constant 0 : index
    %23 = vector.load %arg4[%c0_42, %c1_43, %c0_44] : memref<4x18x18xf32, #tpu.memory_space<vmem>>, vector<4x16x16xf32>
    %c0_45 = arith.constant 0 : index
    %c0_46 = arith.constant 0 : index
    %c3 = arith.constant 3 : index
    %c0_47 = arith.constant 0 : index
    %c0_48 = arith.constant 0 : index
    %24 = vector.load %arg3[%c0_45, %c0_46, %c3, %c0_47, %c0_48] : memref<1x4x9x16x16xf32, #tpu.memory_space<vmem>>, vector<1x4x1x16x16xf32>
    %25 = vector.shape_cast %24 : vector<1x4x1x16x16xf32> to vector<4x16x16xf32>
    %26 = vector.shape_cast %23 : vector<4x16x16xf32> to vector<1x4x1x16x16xf32>
    tpu.vector_store %arg3[%c0_45, %c0_46, %c3, %c0_47, %c0_48], %26 {strides = array<i32>} : memref<1x4x9x16x16xf32, #tpu.memory_space<vmem>>, vector<1x4x1x16x16xf32>,
    %c0_49 = arith.constant 0 : index
    %c1_50 = arith.constant 1 : index
    %c1_51 = arith.constant 1 : index
    %27 = vector.load %arg4[%c0_49, %c1_50, %c1_51] : memref<4x18x18xf32, #tpu.memory_space<vmem>>, vector<4x16x16xf32>
    %c0_52 = arith.constant 0 : index
    %c0_53 = arith.constant 0 : index
    %c4 = arith.constant 4 : index
    %c0_54 = arith.constant 0 : index
    %c0_55 = arith.constant 0 : index
    %28 = vector.load %arg3[%c0_52, %c0_53, %c4, %c0_54, %c0_55] : memref<1x4x9x16x16xf32, #tpu.memory_space<vmem>>, vector<1x4x1x16x16xf32>
    %29 = vector.shape_cast %28 : vector<1x4x1x16x16xf32> to vector<4x16x16xf32>
    %30 = vector.shape_cast %27 : vector<4x16x16xf32> to vector<1x4x1x16x16xf32>
    tpu.vector_store %arg3[%c0_52, %c0_53, %c4, %c0_54, %c0_55], %30 {strides = array<i32>} : memref<1x4x9x16x16xf32, #tpu.memory_space<vmem>>, vector<1x4x1x16x16xf32>,
    %c0_56 = arith.constant 0 : index
    %c1_57 = arith.constant 1 : index
    %c2_58 = arith.constant 2 : index
    %31 = vector.load %arg4[%c0_56, %c1_57, %c2_58] : memref<4x18x18xf32, #tpu.memory_space<vmem>>, vector<4x16x16xf32>
    %c0_59 = arith.constant 0 : index
    %c0_60 = arith.constant 0 : index
    %c5 = arith.constant 5 : index
    %c0_61 = arith.constant 0 : index
    %c0_62 = arith.constant 0 : index
    %32 = vector.load %arg3[%c0_59, %c0_60, %c5, %c0_61, %c0_62] : memref<1x4x9x16x16xf32, #tpu.memory_space<vmem>>, vector<1x4x1x16x16xf32>
    %33 = vector.shape_cast %32 : vector<1x4x1x16x16xf32> to vector<4x16x16xf32>
    %34 = vector.shape_cast %31 : vector<4x16x16xf32> to vector<1x4x1x16x16xf32>
    tpu.vector_store %arg3[%c0_59, %c0_60, %c5, %c0_61, %c0_62], %34 {strides = array<i32>} : memref<1x4x9x16x16xf32, #tpu.memory_space<vmem>>, vector<1x4x1x16x16xf32>,
    %c0_63 = arith.constant 0 : index
    %c2_64 = arith.constant 2 : index
    %c0_65 = arith.constant 0 : index
    %35 = vector.load %arg4[%c0_63, %c2_64, %c0_65] : memref<4x18x18xf32, #tpu.memory_space<vmem>>, vector<4x16x16xf32>
    %c0_66 = arith.constant 0 : index
    %c0_67 = arith.constant 0 : index
    %c6 = arith.constant 6 : index
    %c0_68 = arith.constant 0 : index
    %c0_69 = arith.constant 0 : index
    %36 = vector.load %arg3[%c0_66, %c0_67, %c6, %c0_68, %c0_69] : memref<1x4x9x16x16xf32, #tpu.memory_space<vmem>>, vector<1x4x1x16x16xf32>
    %37 = vector.shape_cast %36 : vector<1x4x1x16x16xf32> to vector<4x16x16xf32>
    %38 = vector.shape_cast %35 : vector<4x16x16xf32> to vector<1x4x1x16x16xf32>
    tpu.vector_store %arg3[%c0_66, %c0_67, %c6, %c0_68, %c0_69], %38 {strides = array<i32>} : memref<1x4x9x16x16xf32, #tpu.memory_space<vmem>>, vector<1x4x1x16x16xf32>,
    %c0_70 = arith.constant 0 : index
    %c2_71 = arith.constant 2 : index
    %c1_72 = arith.constant 1 : index
    %39 = vector.load %arg4[%c0_70, %c2_71, %c1_72] : memref<4x18x18xf32, #tpu.memory_space<vmem>>, vector<4x16x16xf32>
    %c0_73 = arith.constant 0 : index
    %c0_74 = arith.constant 0 : index
    %c7 = arith.constant 7 : index
    %c0_75 = arith.constant 0 : index
    %c0_76 = arith.constant 0 : index
    %40 = vector.load %arg3[%c0_73, %c0_74, %c7, %c0_75, %c0_76] : memref<1x4x9x16x16xf32, #tpu.memory_space<vmem>>, vector<1x4x1x16x16xf32>
    %41 = vector.shape_cast %40 : vector<1x4x1x16x16xf32> to vector<4x16x16xf32>
    %42 = vector.shape_cast %39 : vector<4x16x16xf32> to vector<1x4x1x16x16xf32>
    tpu.vector_store %arg3[%c0_73, %c0_74, %c7, %c0_75, %c0_76], %42 {strides = array<i32>} : memref<1x4x9x16x16xf32, #tpu.memory_space<vmem>>, vector<1x4x1x16x16xf32>,
    %c0_77 = arith.constant 0 : index
    %c2_78 = arith.constant 2 : index
    %c2_79 = arith.constant 2 : index
    %43 = vector.load %arg4[%c0_77, %c2_78, %c2_79] : memref<4x18x18xf32, #tpu.memory_space<vmem>>, vector<4x16x16xf32>
    %c0_80 = arith.constant 0 : index
    %c0_81 = arith.constant 0 : index
    %c8 = arith.constant 8 : index
    %c0_82 = arith.constant 0 : index
    %c0_83 = arith.constant 0 : index
    %44 = vector.load %arg3[%c0_80, %c0_81, %c8, %c0_82, %c0_83] : memref<1x4x9x16x16xf32, #tpu.memory_space<vmem>>, vector<1x4x1x16x16xf32>
    %45 = vector.shape_cast %44 : vector<1x4x1x16x16xf32> to vector<4x16x16xf32>
    %46 = vector.shape_cast %43 : vector<4x16x16xf32> to vector<1x4x1x16x16xf32>
    tpu.vector_store %arg3[%c0_80, %c0_81, %c8, %c0_82, %c0_83], %46 {strides = array<i32>} : memref<1x4x9x16x16xf32, #tpu.memory_space<vmem>>, vector<1x4x1x16x16xf32>,
    return
  }
  func.func @transform_0(%arg0: i32, %arg1: i32) -> (i32, i32, i32, i32) {
    %c0_i32 = arith.constant 0 : i32
    %c0_i32_0 = arith.constant 0 : i32
    %c0_i32_1 = arith.constant 0 : i32
    return %arg0, %arg1, %c0_i32, %c0_i32_0 : i32, i32, i32, i32
  }
  func.func @transform_1(%arg0: i32, %arg1: i32) -> (i32, i32, i32, i32, i32) {
    %c0_i32 = arith.constant 0 : i32
    %c0_i32_0 = arith.constant 0 : i32
    %c0_i32_1 = arith.constant 0 : i32
    %c0_i32_2 = arith.constant 0 : i32
    return %arg0, %arg1, %c0_i32, %c0_i32_0, %c0_i32_1 : i32, i32, i32, i32, i32
  }
}

</mosaic_0001>

<llo_original>
// kernel: tpu_custom_call.1
$region0: #{tpu_custom_call.1}
  #allocation0 [shape = 'u32[]', space=smem, size = 0x4, offset = 0x4, fixed_abs, tag = 'smem constant byte address 0x4 - core index']
  #allocation1 [shape = 'u32[72,128]{1,0:T(1,128)}', space=vmem, size = 0x9000, scoped, tag = 'internal scratch']
  #allocation2 [shape = 'f32[4,18,18]{2,1,0:T(8,128)}', space=vmem, size = 0xc000, scoped, tag = 'scratch operand']
  %s0 = inlined_call_operand.hbm [shape: f32[2,4,16,16], index: 0, kind: input, shape index: {}]
  %s1 = inlined_call_operand.hbm [shape: f32[2,4,9,16,16], index: 1, kind: output, shape index: {}]
  %s2 = sld [smem:[#allocation0]]
  $region41: #{tpu_custom_call.1} parent=0
    _
  %s4 = ssub.s32 1, %s2
  %s5 = scalar_select 0, %s4, %s2
  $region1: #{tpu_custom_call.1} parent=0
    #allocation3 [shape = 'u8[65536]{0}', space=vmem, size = 0x10000, scoped, tag = 'input window, operand 0']
    #allocation4 [shape = 's32[2]{0}', space=sflag, size = 0x8, scoped, tag = 'scoped memory for tpu_custom_call.1']
    #allocation5 [shape = 's32[2]{0}', space=sflag, size = 0x8, scoped, tag = 'scoped memory for tpu_custom_call.1']
    #allocation6 [shape = 'u8[589824]{0}', space=vmem, size = 0x90000, scoped, tag = 'output window, operand 0']
    %6 = vsyncpa [#allocation4], 0
    %s7 = scalar_lea.sflag [#allocation4], 1
    %8 = vsyncpa %s7, 0
    %9 = vsyncpa [#allocation5], 0
    %s10 = scalar_lea.sflag [#allocation5], 1
    %11 = vsyncpa %s10, 0
    loop: start=0, step=1, limit=4
    $region2: #{tpu_custom_call.1} parent=1 // loop_pre_header
      _
    $region3: #{tpu_custom_call.1} parent=1 // loop_header
      %s13 = sphi 0, %s17
      %p14 = scmp.ge.s32.totalorder %s13, 4
      %s20 = sphi 0, %s32
      %s21 = sphi 0, %s28
      %s22 = sphi 0, %s20
      %s23 = sphi 0, %s21
      %s24 = sphi 0, %s22
      %s25 = sphi 0, %s23
      %s37 = sphi 0, %s39
      %s40 = sphi 0, %s37
      %s41 = sphi 0, %s40
      %s57 = sphi 0, %s41
      %s65 = sphi 0, %s67
      %s68 = sphi 0, %s65
      %s69 = sphi 0, %s68
      %s85 = sphi 0, %s69
    $region4: #{tpu_custom_call.1} parent=1 // loop_header_branch
      %16 = sbr.rel (%p14) target = $region8
    $region5: #{tpu_custom_call.1} parent=1 // loop_body
      %s18 = ssub.s32 %s13, 1
      %s19 = ssub.s32 %s13, 2
      %s26 = sadd.s32 1, %s21
      %p27 = scmp.ge.s32.totalorder %s26, 1
      %s28 = scalar_select %p27, 0, %s26
      %s29 = sadd.s32 1, %s20
      %s30 = scalar_select %p27, %s29, %s20
      %p31 = scmp.ge.s32.totalorder %s30, 2
      %s32 = scalar_select %p31, 0, %s30
      %s33 = ssub.s32 %s20, %s32
      %s34 = ssub.s32 %s21, %s28
      %s35 = sor.u32 %s33, %s34
      %p36 = scmp.eq.s32.totalorder %s35, 0
      %s38 = sadd.s32 %s37, 1
      %s39 = scalar_select %p36, %s37, %s38
      %p42 = pneg %p36
      %p43 = scmp.eq.s32.totalorder %s13, 1
      %p44 = por %p42, %p43
      %p45 = scmp.ne.s32.totalorder %s37, %s40
      %p46 = scmp.eq.s32.totalorder %s13, 0
      %p47 = por %p45, %p46
      %p48 = scmp.ne.s32.totalorder %s37, %s40
      %p49 = scmp.eq.s32.totalorder %s18, 1
      %p50 = por %p48, %p49
      %p51 = scmp.ne.s32.totalorder %s40, %s41
      %p52 = scmp.eq.s32.totalorder %s18, 0
      %p53 = por %p51, %p52
      %p54 = scmp.ne.s32.totalorder %s40, %s41
      %p55 = scmp.eq.s32.totalorder %s19, 1
      %p56 = por %p54, %p55
      %p58 = scmp.ne.s32.totalorder %s41, %s57
      %p59 = scmp.eq.s32.totalorder %s19, 0
      %p60 = por %p58, %p59
      %s61 = ssub.s32 %s20, %s32
      %s62 = ssub.s32 %s21, %s28
      %s63 = sor.u32 %s61, %s62
      %p64 = scmp.eq.s32.totalorder %s63, 0
      %s66 = sadd.s32 %s65, 1
      %s67 = scalar_select %p64, %s65, %s66
      %p70 = pneg %p64
      %p71 = scmp.eq.s32.totalorder %s13, 1
      %p72 = por %p70, %p71
      %p73 = scmp.ne.s32.totalorder %s65, %s68
      %p74 = scmp.eq.s32.totalorder %s13, 0
      %p75 = por %p73, %p74
      %p76 = scmp.ne.s32.totalorder %s65, %s68
      %p77 = scmp.eq.s32.totalorder %s18, 1
      %p78 = por %p76, %p77
      %p79 = scmp.ne.s32.totalorder %s68, %s69
      %p80 = scmp.eq.s32.totalorder %s18, 0
      %p81 = por %p79, %p80
      %p82 = scmp.ne.s32.totalorder %s68, %s69
      %p83 = scmp.eq.s32.totalorder %s19, 1
      %p84 = por %p82, %p83
      %p86 = scmp.ne.s32.totalorder %s69, %s85
      %p87 = scmp.eq.s32.totalorder %s19, 0
      %p88 = por %p86, %p87
      %p89 = scmp.le.s32.totalorder 1, %s13
      %p90 = scmp.lt.s32.totalorder %s13, 3
      %p91 = pnand %p89, %p90
      %p92 = pneg %p91
      // Predicated region
      $region9: #{tpu_custom_call.1} parent=5 // pred_check
        _
      $region10: #{tpu_custom_call.1} parent=5 // pred_check_branch
        %94 = sbr.rel (%p91) target = $region12
      $region11: #{tpu_custom_call.1} parent=5 // pred_region
        %s95 = ssub.s32 %s13, 1
      $region12: #{tpu_custom_call.1} parent=5 // pred_fallthru
        _
      %p96 = scmp.lt.s32.totalorder %s13, 2
      // Predicated region
      $region13: #{tpu_custom_call.1} parent=5 // pred_check
        %p97 = pneg %p96
      $region14: #{tpu_custom_call.1} parent=5 // pred_check_branch
        %99 = sbr.rel (%p97) target = $region16
      $region15: #{tpu_custom_call.1} parent=5 // pred_region
        // Predicated region
        $region17: #{tpu_custom_call.1} parent=15 // pred_check
          %p100 = pneg %p47
        $region18: #{tpu_custom_call.1} parent=15 // pred_check_branch
          %102 = sbr.rel (%p100) target = $region20
        $region19: #{tpu_custom_call.1} parent=15 // pred_region
          %s103 = sand.u32 %s37, 1
          %s104 = scalar_lea.sflag [#allocation4], %s103
          %s105 = sand.u32 %s37, 1
          %s106 = smul.addr %s105, 64
          %s107 = scalar_lea.vmem [#allocation3], %s106
          %s108 = smul.u32 4, %s21
          %110 = vsyncadd %s104, 0
          %s111 = smul.addr %s108, 2
          %s112 = smul.addr %s20, 8
          %s113 = sadd.s32 %s111, %s112
          %s114 = smul.addr %s113, 8
          %s115 = scalar_lea.hbm %s0, %s114
          %s116 = sshll.u32 %s115, 4
          %s117 = int_to_ptr.hbm [resolvable:$true] %s116
          %s118 = sshll.u32 %s107, 4
          %s119 = int_to_ptr.vmem [resolvable:$true] %s118
          %124 = dma.hbm_to_vmem [thread:$0]  %s117, 1024, %s119, %s104, 128, 128, 8
        $region20: #{tpu_custom_call.1} parent=15 // pred_fallthru
          _
      $region16: #{tpu_custom_call.1} parent=5 // pred_fallthru
        _
      %p125 = scmp.le.s32.totalorder 1, %s13
      %p126 = scmp.lt.s32.totalorder %s13, 3
      %p127 = pnand %p125, %p126
      %p128 = pneg %p127
      // Predicated region
      $region21: #{tpu_custom_call.1} parent=5 // pred_check
        _
      $region22: #{tpu_custom_call.1} parent=5 // pred_check_branch
        %130 = sbr.rel (%p127) target = $region24
      $region23: #{tpu_custom_call.1} parent=5 // pred_region
        %s131 = ssub.s32 %s13, 1
        %s132 = sand.u32 %s40, 1
        %s133 = scalar_lea.sflag [#allocation4], %s132
        %s134 = sand.u32 %s40, 1
        %s135 = smul.addr %s134, 64
        %s136 = scalar_lea.vmem [#allocation3], %s135
        // Predicated region
        $region25: #{tpu_custom_call.1} parent=23 // pred_check
          %p137 = pneg %p53
        $region26: #{tpu_custom_call.1} parent=23 // pred_check_branch
          %139 = sbr.rel (%p137) target = $region28
        $region27: #{tpu_custom_call.1} parent=23 // pred_region
          %141 = dma.done %s133, 1024
        $region28: #{tpu_custom_call.1} parent=23 // pred_fallthru
          _
        %s142 = sand.u32 %s40, 1
        %s143 = scalar_lea.sflag [#allocation4], %s142
        %s144 = sand.u32 %s40, 1
        %s145 = smul.addr %s144, 64
        %s146 = scalar_lea.vmem [#allocation3], %s145
        %p147 = pneg %p53
        %p148 = pneg %p50
        %p149 = pneg %p81
        %p150 = pneg %p78
        %s151 = sand.u32 %s68, 1
        %s152 = scalar_lea.sflag [#allocation5], %s151
        %s153 = sand.u32 %s68, 1
        %s154 = smul.addr %s153, 576
        %s155 = scalar_lea.vmem [#allocation6], %s154
        %s156 = smul.u32 4, %s23
        %s157 = smul.u32 4, %s23
        %vm158 = vcmask 139264
        %159 = vst.msk [vmem:[#allocation2] sm:$0x1] %vm158, 0.0
        %160 = vst.msk [vmem:[#allocation2 + $0x18] sm:$0x1] %vm158, 0.0
        %161 = vst.msk [vmem:[#allocation2 + $0x30] sm:$0x1] %vm158, 0.0
        %162 = vst.msk [vmem:[#allocation2 + $0x48] sm:$0x1] %vm158, 0.0
        %163 = vst.msk [vmem:[#allocation2 + $0x11] sm:$0x1] %vm158, 0.0
        %164 = vst.msk [vmem:[#allocation2 + $0x29] sm:$0x1] %vm158, 0.0
        %165 = vst.msk [vmem:[#allocation2 + $0x41] sm:$0x1] %vm158, 0.0
        %166 = vst.msk [vmem:[#allocation2 + $0x59] sm:$0x1] %vm158, 0.0
        %vm167 = vcmask 7168
        %168 = vst.msk [vmem:[#allocation2] sm:$0xff] %vm167, 0.0
        %169 = vst.msk [vmem:[#allocation2 + $0x8] sm:$0xff] %vm167, 0.0
        %vm170 = vcmask 1024
        %171 = vst.msk [vmem:[#allocation2 + $0x10] sm:$0x3] %vm170, 0.0
        %172 = vst.msk [vmem:[#allocation2 + $0x18] sm:$0xff] %vm167, 0.0
        %173 = vst.msk [vmem:[#allocation2 + $0x20] sm:$0xff] %vm167, 0.0
        %174 = vst.msk [vmem:[#allocation2 + $0x28] sm:$0x3] %vm170, 0.0
        %175 = vst.msk [vmem:[#allocation2 + $0x30] sm:$0xff] %vm167, 0.0
        %176 = vst.msk [vmem:[#allocation2 + $0x38] sm:$0xff] %vm167, 0.0
        %177 = vst.msk [vmem:[#allocation2 + $0x40] sm:$0x3] %vm170, 0.0
        %178 = vst.msk [vmem:[#allocation2 + $0x48] sm:$0xff] %vm167, 0.0
        %179 = vst.msk [vmem:[#allocation2 + $0x50] sm:$0xff] %vm167, 0.0
        %180 = vst.msk [vmem:[#allocation2 + $0x58] sm:$0x3] %vm170, 0.0
        %vm181 = vcmask 146568
        %182 = vst.msk [vmem:[#allocation2] sm:$0xff] %vm181, 0.0
        %183 = vst.msk [vmem:[#allocation2 + $0x8] sm:$0xff] %vm181, 0.0
        %vm184 = vcmask 140424
        %185 = vst.msk [vmem:[#allocation2 + $0x10] sm:$0x3] %vm184, 0.0
        %186 = vst.msk [vmem:[#allocation2 + $0x18] sm:$0xff] %vm181, 0.0
        %187 = vst.msk [vmem:[#allocation2 + $0x20] sm:$0xff] %vm181, 0.0
        %188 = vst.msk [vmem:[#allocation2 + $0x28] sm:$0x3] %vm184, 0.0
        %189 = vst.msk [vmem:[#allocation2 + $0x30] sm:$0xff] %vm181, 0.0
        %190 = vst.msk [vmem:[#allocation2 + $0x38] sm:$0xff] %vm181, 0.0
        %191 = vst.msk [vmem:[#allocation2 + $0x40] sm:$0x3] %vm184, 0.0
        %192 = vst.msk [vmem:[#allocation2 + $0x48] sm:$0xff] %vm181, 0.0
        %193 = vst.msk [vmem:[#allocation2 + $0x50] sm:$0xff] %vm181, 0.0
        %194 = vst.msk [vmem:[#allocation2 + $0x58] sm:$0x3] %vm184, 0.0
        %v195 = vld [vmem:[%s136] sm:$0xff]
        %v196 = vld [vmem:[%s136 + $0x8] sm:$0xff]
        %v197 = vld [vmem:[%s136 + $0x10] sm:$0xff]
        %v198 = vld [vmem:[%s136 + $0x18] sm:$0xff]
        %v199 = vld [vmem:[%s136 + $0x20] sm:$0xff]
        %v200 = vld [vmem:[%s136 + $0x28] sm:$0xff]
        %v201 = vld [vmem:[%s136 + $0x30] sm:$0xff]
        %v202 = vld [vmem:[%s136 + $0x38] sm:$0xff]
        %211 = vrot.lane.b32.xlu0 %v195, 1
        %v212 = vpop.permute.xlu0 %211
        %213 = vrot.lane.b32.xlu0 %v196, 1
        %v214 = vpop.permute.xlu0 %213
        %215 = vrot.lane.b32.xlu0 %v197, 1
        %v216 = vpop.permute.xlu0 %215
        %217 = vrot.lane.b32.xlu0 %v198, 1
        %v218 = vpop.permute.xlu0 %217
        %219 = vrot.lane.b32.xlu0 %v199, 1
        %v220 = vpop.permute.xlu0 %219
        %221 = vrot.lane.b32.xlu0 %v200, 1
        %v222 = vpop.permute.xlu0 %221
        %223 = vrot.lane.b32.xlu0 %v201, 1
        %v224 = vpop.permute.xlu0 %223
        %225 = vrot.lane.b32.xlu0 %v202, 1
        %v226 = vpop.permute.xlu0 %225
        %vm235 = vcmask 138248
        %236 = vst.msk [vmem:[#allocation2 + $0x1] sm:$0xff] %vm235, %v212
        %237 = vst.msk [vmem:[#allocation2 + $0x9] sm:$0xff] %vm235, %v214
        %238 = vst.msk [vmem:[#allocation2 + $0x19] sm:$0xff] %vm235, %v216
        %239 = vst.msk [vmem:[#allocation2 + $0x21] sm:$0xff] %vm235, %v218
        %240 = vst.msk [vmem:[#allocation2 + $0x31] sm:$0xff] %vm235, %v220
        %241 = vst.msk [vmem:[#allocation2 + $0x39] sm:$0xff] %vm235, %v222
        %242 = vst.msk [vmem:[#allocation2 + $0x49] sm:$0xff] %vm235, %v224
        %243 = vst.msk [vmem:[#allocation2 + $0x51] sm:$0xff] %vm235, %v226
        %v244 = vld [vmem:[#allocation2] sm:$0xff]
        %v245 = vld [vmem:[#allocation2 + $0x8] sm:$0xff]
        %v246 = vld [vmem:[#allocation2 + $0x18] sm:$0xff]
        %v247 = vld [vmem:[#allocation2 + $0x20] sm:$0xff]
        %v248 = vld [vmem:[#allocation2 + $0x30] sm:$0xff]
        %v249 = vld [vmem:[#allocation2 + $0x38] sm:$0xff]
        %v250 = vld [vmem:[#allocation2 + $0x48] sm:$0xff]
        %v251 = vld [vmem:[#allocation2 + $0x50] sm:$0xff]
        %vm252 = vcmask 130048
        %253 = vst.msk [vmem:[%s155] sm:$0xff] %vm252, %v244
        %254 = vst.msk [vmem:[%s155 + $0x8] sm:$0xff] %vm252, %v245
        %255 = vst.msk [vmem:[%s155 + $0x90] sm:$0xff] %vm252, %v246
        %256 = vst.msk [vmem:[%s155 + $0x98] sm:$0xff] %vm252, %v247
        %257 = vst.msk [vmem:[%s155 + $0x120] sm:$0xff] %vm252, %v248
        %258 = vst.msk [vmem:[%s155 + $0x128] sm:$0xff] %vm252, %v249
        %259 = vst.msk [vmem:[%s155 + $0x1b0] sm:$0xff] %vm252, %v250
        %260 = vst.msk [vmem:[%s155 + $0x1b8] sm:$0xff] %vm252, %v251
        %v261 = vld [vmem:[#allocation2] sm:$0xff]
        %v262 = vld [vmem:[#allocation2 + $0x8] sm:$0xff]
        %v263 = vld [vmem:[#allocation2 + $0x18] sm:$0xff]
        %v264 = vld [vmem:[#allocation2 + $0x20] sm:$0xff]
        %v265 = vld [vmem:[#allocation2 + $0x30] sm:$0xff]
        %v266 = vld [vmem:[#allocation2 + $0x38] sm:$0xff]
        %v267 = vld [vmem:[#allocation2 + $0x48] sm:$0xff]
        %v268 = vld [vmem:[#allocation2 + $0x50] sm:$0xff]
        %277 = vrot.lane.b32.xlu0 %v261, 127
        %v278 = vpop.permute.xlu0 %277
        %279 = vrot.lane.b32.xlu0 %v262, 127
        %v280 = vpop.permute.xlu0 %279
        %281 = vrot.lane.b32.xlu0 %v263, 127
        %v282 = vpop.permute.xlu0 %281
        %283 = vrot.lane.b32.xlu0 %v264, 127
        %v284 = vpop.permute.xlu0 %283
        %285 = vrot.lane.b32.xlu0 %v265, 127
        %v286 = vpop.permute.xlu0 %285
        %287 = vrot.lane.b32.xlu0 %v266, 127
        %v288 = vpop.permute.xlu0 %287
        %289 = vrot.lane.b32.xlu0 %v267, 127
        %v290 = vpop.permute.xlu0 %289
        %291 = vrot.lane.b32.xlu0 %v268, 127
        %v292 = vpop.permute.xlu0 %291
        %s301 = scalar_lea.vmem %s155, 16 [#allocation6]
        %302 = vst.msk [vmem:[%s301] sm:$0xff] %vm252, %v278
        %303 = vst.msk [vmem:[%s301 + $0x8] sm:$0xff] %vm252, %v280
        %304 = vst.msk [vmem:[%s301 + $0x90] sm:$0xff] %vm252, %v282
        %305 = vst.msk [vmem:[%s301 + $0x98] sm:$0xff] %vm252, %v284
        %306 = vst.msk [vmem:[%s301 + $0x120] sm:$0xff] %vm252, %v286
        %307 = vst.msk [vmem:[%s301 + $0x128] sm:$0xff] %vm252, %v288
        %308 = vst.msk [vmem:[%s301 + $0x1b0] sm:$0xff] %vm252, %v290
        %309 = vst.msk [vmem:[%s301 + $0x1b8] sm:$0xff] %vm252, %v292
        %v310 = vld [vmem:[#allocation2] sm:$0xff]
        %v311 = vld [vmem:[#allocation2 + $0x8] sm:$0xff]
        %v312 = vld [vmem:[#allocation2 + $0x18] sm:$0xff]
        %v313 = vld [vmem:[#allocation2 + $0x20] sm:$0xff]
        %v314 = vld [vmem:[#allocation2 + $0x30] sm:$0xff]
        %v315 = vld [vmem:[#allocation2 + $0x38] sm:$0xff]
        %v316 = vld [vmem:[#allocation2 + $0x48] sm:$0xff]
        %v317 = vld [vmem:[#allocation2 + $0x50] sm:$0xff]
        %326 = vrot.lane.b32.xlu0 %v310, 126
        %v327 = vpop.permute.xlu0 %326
        %328 = vrot.lane.b32.xlu0 %v311, 126
        %v329 = vpop.permute.xlu0 %328
        %330 = vrot.lane.b32.xlu0 %v312, 126
        %v331 = vpop.permute.xlu0 %330
        %332 = vrot.lane.b32.xlu0 %v313, 126
        %v333 = vpop.permute.xlu0 %332
        %334 = vrot.lane.b32.xlu0 %v314, 126
        %v335 = vpop.permute.xlu0 %334
        %336 = vrot.lane.b32.xlu0 %v315, 126
        %v337 = vpop.permute.xlu0 %336
        %338 = vrot.lane.b32.xlu0 %v316, 126
        %v339 = vpop.permute.xlu0 %338
        %340 = vrot.lane.b32.xlu0 %v317, 126
        %v341 = vpop.permute.xlu0 %340
        %s350 = scalar_lea.vmem %s155, 32 [#allocation6]
        %351 = vst.msk [vmem:[%s350] sm:$0xff] %vm252, %v327
        %352 = vst.msk [vmem:[%s350 + $0x8] sm:$0xff] %vm252, %v329
        %353 = vst.msk [vmem:[%s350 + $0x90] sm:$0xff] %vm252, %v331
        %354 = vst.msk [vmem:[%s350 + $0x98] sm:$0xff] %vm252, %v333
        %355 = vst.msk [vmem:[%s350 + $0x120] sm:$0xff] %vm252, %v335
        %356 = vst.msk [vmem:[%s350 + $0x128] sm:$0xff] %vm252, %v337
        %357 = vst.msk [vmem:[%s350 + $0x1b0] sm:$0xff] %vm252, %v339
        %358 = vst.msk [vmem:[%s350 + $0x1b8] sm:$0xff] %vm252, %v341
        %v359 = vld [vmem:[#allocation2 + $0x1] sm:$0xff]
        %v360 = vld [vmem:[#allocation2 + $0x9] sm:$0xff]
        %v361 = vld [vmem:[#allocation2 + $0x19] sm:$0xff]
        %v362 = vld [vmem:[#allocation2 + $0x21] sm:$0xff]
        %v363 = vld [vmem:[#allocation2 + $0x31] sm:$0xff]
        %v364 = vld [vmem:[#allocation2 + $0x39] sm:$0xff]
        %v365 = vld [vmem:[#allocation2 + $0x49] sm:$0xff]
        %v366 = vld [vmem:[#allocation2 + $0x51] sm:$0xff]
        %s367 = scalar_lea.vmem %s155, 48 [#allocation6]
        %368 = vst.msk [vmem:[%s367] sm:$0xff] %vm252, %v359
        %369 = vst.msk [vmem:[%s367 + $0x8] sm:$0xff] %vm252, %v360
        %370 = vst.msk [vmem:[%s367 + $0x90] sm:$0xff] %vm252, %v361
        %371 = vst.msk [vmem:[%s367 + $0x98] sm:$0xff] %vm252, %v362
        %372 = vst.msk [vmem:[%s367 + $0x120] sm:$0xff] %vm252, %v363
        %373 = vst.msk [vmem:[%s367 + $0x128] sm:$0xff] %vm252, %v364
        %374 = vst.msk [vmem:[%s367 + $0x1b0] sm:$0xff] %vm252, %v365
        %375 = vst.msk [vmem:[%s367 + $0x1b8] sm:$0xff] %vm252, %v366
        %v376 = vld [vmem:[#allocation2 + $0x1] sm:$0xff]
        %v377 = vld [vmem:[#allocation2 + $0x9] sm:$0xff]
        %v378 = vld [vmem:[#allocation2 + $0x19] sm:$0xff]
        %v379 = vld [vmem:[#allocation2 + $0x21] sm:$0xff]
        %v380 = vld [vmem:[#allocation2 + $0x31] sm:$0xff]
        %v381 = vld [vmem:[#allocation2 + $0x39] sm:$0xff]
        %v382 = vld [vmem:[#allocation2 + $0x49] sm:$0xff]
        %v383 = vld [vmem:[#allocation2 + $0x51] sm:$0xff]
        %392 = vrot.lane.b32.xlu0 %v376, 127
        %v393 = vpop.permute.xlu0 %392
        %394 = vrot.lane.b32.xlu0 %v377, 127
        %v395 = vpop.permute.xlu0 %394
        %396 = vrot.lane.b32.xlu0 %v378, 127
        %v397 = vpop.permute.xlu0 %396
        %398 = vrot.lane.b32.xlu0 %v379, 127
        %v399 = vpop.permute.xlu0 %398
        %400 = vrot.lane.b32.xlu0 %v380, 127
        %v401 = vpop.permute.xlu0 %400
        %402 = vrot.lane.b32.xlu0 %v381, 127
        %v403 = vpop.permute.xlu0 %402
        %404 = vrot.lane.b32.xlu0 %v382, 127
        %v405 = vpop.permute.xlu0 %404
        %406 = vrot.lane.b32.xlu0 %v383, 127
        %v407 = vpop.permute.xlu0 %406
        %s416 = scalar_lea.vmem %s155, 64 [#allocation6]
        %417 = vst.msk [vmem:[%s416] sm:$0xff] %vm252, %v393
        %418 = vst.msk [vmem:[%s416 + $0x8] sm:$0xff] %vm252, %v395
        %419 = vst.msk [vmem:[%s416 + $0x90] sm:$0xff] %vm252, %v397
        %420 = vst.msk [vmem:[%s416 + $0x98] sm:$0xff] %vm252, %v399
        %421 = vst.msk [vmem:[%s416 + $0x120] sm:$0xff] %vm252, %v401
        %422 = vst.msk [vmem:[%s416 + $0x128] sm:$0xff] %vm252, %v403
        %423 = vst.msk [vmem:[%s416 + $0x1b0] sm:$0xff] %vm252, %v405
        %424 = vst.msk [vmem:[%s416 + $0x1b8] sm:$0xff] %vm252, %v407
        %v425 = vld [vmem:[#allocation2 + $0x1] sm:$0xff]
        %v426 = vld [vmem:[#allocation2 + $0x9] sm:$0xff]
        %v427 = vld [vmem:[#allocation2 + $0x19] sm:$0xff]
        %v428 = vld [vmem:[#allocation2 + $0x21] sm:$0xff]
        %v429 = vld [vmem:[#allocation2 + $0x31] sm:$0xff]
        %v430 = vld [vmem:[#allocation2 + $0x39] sm:$0xff]
        %v431 = vld [vmem:[#allocation2 + $0x49] sm:$0xff]
        %v432 = vld [vmem:[#allocation2 + $0x51] sm:$0xff]
        %441 = vrot.lane.b32.xlu0 %v425, 126
        %v442 = vpop.permute.xlu0 %441
        %443 = vrot.lane.b32.xlu0 %v426, 126
        %v444 = vpop.permute.xlu0 %443
        %445 = vrot.lane.b32.xlu0 %v427, 126
        %v446 = vpop.permute.xlu0 %445
        %447 = vrot.lane.b32.xlu0 %v428, 126
        %v448 = vpop.permute.xlu0 %447
        %449 = vrot.lane.b32.xlu0 %v429, 126
        %v450 = vpop.permute.xlu0 %449
        %451 = vrot.lane.b32.xlu0 %v430, 126
        %v452 = vpop.permute.xlu0 %451
        %453 = vrot.lane.b32.xlu0 %v431, 126
        %v454 = vpop.permute.xlu0 %453
        %455 = vrot.lane.b32.xlu0 %v432, 126
        %v456 = vpop.permute.xlu0 %455
        %s465 = scalar_lea.vmem %s155, 80 [#allocation6]
        %466 = vst.msk [vmem:[%s465] sm:$0xff] %vm252, %v442
        %467 = vst.msk [vmem:[%s465 + $0x8] sm:$0xff] %vm252, %v444
        %468 = vst.msk [vmem:[%s465 + $0x90] sm:$0xff] %vm252, %v446
        %469 = vst.msk [vmem:[%s465 + $0x98] sm:$0xff] %vm252, %v448
        %470 = vst.msk [vmem:[%s465 + $0x120] sm:$0xff] %vm252, %v450
        %471 = vst.msk [vmem:[%s465 + $0x128] sm:$0xff] %vm252, %v452
        %472 = vst.msk [vmem:[%s465 + $0x1b0] sm:$0xff] %vm252, %v454
        %473 = vst.msk [vmem:[%s465 + $0x1b8] sm:$0xff] %vm252, %v456
        %v474 = vld [vmem:[#allocation2 + $0x2] sm:$0xff]
        %v475 = vld [vmem:[#allocation2 + $0xa] sm:$0xff]
        %v476 = vld [vmem:[#allocation2 + $0x1a] sm:$0xff]
        %v477 = vld [vmem:[#allocation2 + $0x22] sm:$0xff]
        %v478 = vld [vmem:[#allocation2 + $0x32] sm:$0xff]
        %v479 = vld [vmem:[#allocation2 + $0x3a] sm:$0xff]
        %v480 = vld [vmem:[#allocation2 + $0x4a] sm:$0xff]
        %v481 = vld [vmem:[#allocation2 + $0x52] sm:$0xff]
        %s482 = scalar_lea.vmem %s155, 96 [#allocation6]
        %483 = vst.msk [vmem:[%s482] sm:$0xff] %vm252, %v474
        %484 = vst.msk [vmem:[%s482 + $0x8] sm:$0xff] %vm252, %v475
        %485 = vst.msk [vmem:[%s482 + $0x90] sm:$0xff] %vm252, %v476
        %486 = vst.msk [vmem:[%s482 + $0x98] sm:$0xff] %vm252, %v477
        %487 = vst.msk [vmem:[%s482 + $0x120] sm:$0xff] %vm252, %v478
        %488 = vst.msk [vmem:[%s482 + $0x128] sm:$0xff] %vm252, %v479
        %489 = vst.msk [vmem:[%s482 + $0x1b0] sm:$0xff] %vm252, %v480
        %490 = vst.msk [vmem:[%s482 + $0x1b8] sm:$0xff] %vm252, %v481
        %v491 = vld [vmem:[#allocation2 + $0x2] sm:$0xff]
        %v492 = vld [vmem:[#allocation2 + $0xa] sm:$0xff]
        %v493 = vld [vmem:[#allocation2 + $0x1a] sm:$0xff]
        %v494 = vld [vmem:[#allocation2 + $0x22] sm:$0xff]
        %v495 = vld [vmem:[#allocation2 + $0x32] sm:$0xff]
        %v496 = vld [vmem:[#allocation2 + $0x3a] sm:$0xff]
        %v497 = vld [vmem:[#allocation2 + $0x4a] sm:$0xff]
        %v498 = vld [vmem:[#allocation2 + $0x52] sm:$0xff]
        %507 = vrot.lane.b32.xlu0 %v491, 127
        %v508 = vpop.permute.xlu0 %507
        %509 = vrot.lane.b32.xlu0 %v492, 127
        %v510 = vpop.permute.xlu0 %509
        %511 = vrot.lane.b32.xlu0 %v493, 127
        %v512 = vpop.permute.xlu0 %511
        %513 = vrot.lane.b32.xlu0 %v494, 127
        %v514 = vpop.permute.xlu0 %513
        %515 = vrot.lane.b32.xlu0 %v495, 127
        %v516 = vpop.permute.xlu0 %515
        %517 = vrot.lane.b32.xlu0 %v496, 127
        %v518 = vpop.permute.xlu0 %517
        %519 = vrot.lane.b32.xlu0 %v497, 127
        %v520 = vpop.permute.xlu0 %519
        %521 = vrot.lane.b32.xlu0 %v498, 127
        %v522 = vpop.permute.xlu0 %521
        %s531 = scalar_lea.vmem %s155, 112 [#allocation6]
        %532 = vst.msk [vmem:[%s531] sm:$0xff] %vm252, %v508
        %533 = vst.msk [vmem:[%s531 + $0x8] sm:$0xff] %vm252, %v510
        %534 = vst.msk [vmem:[%s531 + $0x90] sm:$0xff] %vm252, %v512
        %535 = vst.msk [vmem:[%s531 + $0x98] sm:$0xff] %vm252, %v514
        %536 = vst.msk [vmem:[%s531 + $0x120] sm:$0xff] %vm252, %v516
        %537 = vst.msk [vmem:[%s531 + $0x128] sm:$0xff] %vm252, %v518
        %538 = vst.msk [vmem:[%s531 + $0x1b0] sm:$0xff] %vm252, %v520
        %539 = vst.msk [vmem:[%s531 + $0x1b8] sm:$0xff] %vm252, %v522
        %v540 = vld [vmem:[#allocation2 + $0x2] sm:$0xff]
        %v541 = vld [vmem:[#allocation2 + $0xa] sm:$0xff]
        %v542 = vld [vmem:[#allocation2 + $0x1a] sm:$0xff]
        %v543 = vld [vmem:[#allocation2 + $0x22] sm:$0xff]
        %v544 = vld [vmem:[#allocation2 + $0x32] sm:$0xff]
        %v545 = vld [vmem:[#allocation2 + $0x3a] sm:$0xff]
        %v546 = vld [vmem:[#allocation2 + $0x4a] sm:$0xff]
        %v547 = vld [vmem:[#allocation2 + $0x52] sm:$0xff]
        %556 = vrot.lane.b32.xlu0 %v540, 126
        %v557 = vpop.permute.xlu0 %556
        %558 = vrot.lane.b32.xlu0 %v541, 126
        %v559 = vpop.permute.xlu0 %558
        %560 = vrot.lane.b32.xlu0 %v542, 126
        %v561 = vpop.permute.xlu0 %560
        %562 = vrot.lane.b32.xlu0 %v543, 126
        %v563 = vpop.permute.xlu0 %562
        %564 = vrot.lane.b32.xlu0 %v544, 126
        %v565 = vpop.permute.xlu0 %564
        %566 = vrot.lane.b32.xlu0 %v545, 126
        %v567 = vpop.permute.xlu0 %566
        %568 = vrot.lane.b32.xlu0 %v546, 126
        %v569 = vpop.permute.xlu0 %568
        %570 = vrot.lane.b32.xlu0 %v547, 126
        %v571 = vpop.permute.xlu0 %570
        %s580 = scalar_lea.vmem %s155, 128 [#allocation6]
        %581 = vst.msk [vmem:[%s580] sm:$0xff] %vm252, %v557
        %582 = vst.msk [vmem:[%s580 + $0x8] sm:$0xff] %vm252, %v559
        %583 = vst.msk [vmem:[%s580 + $0x90] sm:$0xff] %vm252, %v561
        %584 = vst.msk [vmem:[%s580 + $0x98] sm:$0xff] %vm252, %v563
        %585 = vst.msk [vmem:[%s580 + $0x120] sm:$0xff] %vm252, %v565
        %586 = vst.msk [vmem:[%s580 + $0x128] sm:$0xff] %vm252, %v567
        %587 = vst.msk [vmem:[%s580 + $0x1b0] sm:$0xff] %vm252, %v569
        %588 = vst.msk [vmem:[%s580 + $0x1b8] sm:$0xff] %vm252, %v571
        %s589 = sand.u32 %s68, 1
        %s590 = scalar_lea.sflag [#allocation5], %s589
        %s591 = sand.u32 %s68, 1
        %s592 = smul.addr %s591, 576
        %s593 = scalar_lea.vmem [#allocation6], %s592
        // Predicated region
        $region29: #{tpu_custom_call.1} parent=23 // pred_check
          %p594 = pneg %p78
        $region30: #{tpu_custom_call.1} parent=23 // pred_check_branch
          %596 = sbr.rel (%p594) target = $region32
        $region31: #{tpu_custom_call.1} parent=23 // pred_region
          %s597 = smul.u32 4, %s23
          %599 = vsyncadd %s590, 0
          %s600 = smul.addr %s597, 18
          %s601 = smul.addr %s22, 72
          %s602 = sadd.s32 %s600, %s601
          %s603 = smul.addr %s602, 8
          %s604 = scalar_lea.hbm %s1, %s603
          %s605 = sshll.u32 %s593, 4
          %s606 = int_to_ptr.vmem [resolvable:$true] %s605
          %s607 = sshll.u32 %s604, 4
          %s608 = int_to_ptr.hbm [resolvable:$true] %s607
          %613 = dma.vmem_to_hbm [thread:$0]  %s606, 9216, %s608, %s590, 128, 128, 8
        $region32: #{tpu_custom_call.1} parent=23 // pred_fallthru
          _
      $region24: #{tpu_custom_call.1} parent=5 // pred_fallthru
        _
      %p614 = scmp.le.s32.totalorder 2, %s13
      // Predicated region
      $region33: #{tpu_custom_call.1} parent=5 // pred_check
        %p615 = pneg %p614
      $region34: #{tpu_custom_call.1} parent=5 // pred_check_branch
        %617 = sbr.rel (%p615) target = $region36
      $region35: #{tpu_custom_call.1} parent=5 // pred_region
        %s618 = ssub.s32 %s13, 2
        // Predicated region
        $region37: #{tpu_custom_call.1} parent=35 // pred_check
          %p619 = pneg %p84
        $region38: #{tpu_custom_call.1} parent=35 // pred_check_branch
          %621 = sbr.rel (%p619) target = $region40
        $region39: #{tpu_custom_call.1} parent=35 // pred_region
          %s622 = sand.u32 %s69, 1
          %s623 = scalar_lea.sflag [#allocation5], %s622
          %s624 = sand.u32 %s69, 1
          %s625 = smul.addr %s624, 576
          %s626 = scalar_lea.vmem [#allocation6], %s625
          %628 = dma.done %s623, 9216
        $region40: #{tpu_custom_call.1} parent=35 // pred_fallthru
          _
      $region36: #{tpu_custom_call.1} parent=5 // pred_fallthru
        _
    $region6: #{tpu_custom_call.1} parent=1 // loop_footer
      %s17 = sadd.s32 1, %s13
    $region7: #{tpu_custom_call.1} parent=1 // loop_footer_branch
      %12 = sbr.rel target = $region3
    $region8: #{tpu_custom_call.1} parent=1 // loop_exit
      _
    %629 = vsyncpa [#allocation4], 1
    %s630 = scalar_lea.sflag [#allocation4], 1
    %631 = vsyncpa %s630, 1
    %632 = vsyncpa [#allocation5], 1
    %s633 = scalar_lea.sflag [#allocation5], 1
    %634 = vsyncpa %s633, 1

</llo_original>
